<compile_context>
chip_gen: v7x
topology: tpu7x:2x2x1
jax: 0.10.0
libtpu: 0.0.40
codegen_flags: <defaults>
</compile_context>

<pallas_src>
import functools

import jax
import jax.numpy as jnp
from jax.experimental import pallas as pl
from jax.experimental.pallas import tpu as pltpu

_VMEM_LIMIT = 48 * 1024 * 1024  # <= v7x 64 MiB/TC; plenty on v5e/v6e


# ----------------------------- Pallas kernel --------------------------------

def _resblock_kernel(p1_ref, mask_ref, w1a_ref, s1a_ref, b1a_ref,
                     w2_ref, s2_ref, b2_ref, o_ref, *, cout, shifts):
    """Whole ResBlock for one column tile T = batch_block * P_pad (lane-dense).

    Column coordinate q of an image is the flattened *padded* layer-2 plane
    (R, C) in [0, Ho+2) x [0, Wo+2); interior columns (R,C in [1,Ho]x[1,Wo])
    are real output positions, border/pad columns are discarded by the host.

    p1_ref  : (9*Cin, T)  layer-1 stride-2 im2col patches at plane coords
    mask_ref: (1, T)      1.0 on interior columns, 0.0 on border/pad columns
    w1a_ref : (2*Cout, 9*Cin) [conv1 ; align(1x1 scattered at tap (1,1))]
    s1a_ref : (2*Cout, 1) f32 BN scales   b1a_ref: (2*Cout, 1) f32 BN biases
    w2_ref  : (Cout, 9*Cout) conv2 weights; s2_ref/b2_ref: (Cout, 1) f32 BN
    o_ref   : (Cout, T)   relu(BN(conv2(out1)) + residual) at plane coords
    """
    # ---- sub_layer1 + align_layer: one MXU matmul, f32 BN epilogue ----------
    y = jnp.dot(w1a_ref[...], p1_ref[...], preferred_element_type=jnp.float32)
    y = y * s1a_ref[...] + b1a_ref[...]
    # zeroing the border columns realises conv2's zero padding
    h1 = jnp.maximum(y[:cout, :], 0.0) * mask_ref[...]        # (Cout, T) f32
    res = y[cout:, :]                                          # BN(align(x))

    # ---- sub_layer2: in-kernel 3x3 gather via lane rolls of the plane -------
    # output column q needs h1 column q + (kh-1)*Wp + (kw-1); since
    # pltpu.roll(x, s)[q] == x[q - s], the shift for each tap is s = -d (mod T)
    slabs = [h1 if s == 0 else pltpu.roll(h1, s, axis=1) for s in shifts]
    p2 = jnp.concatenate(slabs, axis=0).astype(w2_ref.dtype)   # (9*Cout, T)
    acc = jnp.dot(w2_ref[...], p2, preferred_element_type=jnp.float32)

    # ---- BN2 + residual + final ReLU (f32 epilogue) --------------------------
    out = acc * s2_ref[...] + b2_ref[...] + res
    o_ref[...] = jnp.maximum(out, 0.0).astype(o_ref.dtype)


# ------------------------------- host glue ----------------------------------

def _fold_bn(conv_bias, gamma, beta, mean, var, eps=1e-5):
    """Inference-mode BN folded to per-channel (scale, bias): BN(conv)=s*Wx+b."""
    scale = gamma / jnp.sqrt(var + eps)
    bias = beta + scale * (conv_bias - mean)
    return scale, bias


def _l1_patches(xp, out_h, out_w):
    """xp: (Cin, N, H+1, W+1) channel-major, pre-padded (top=1, left=1).

    Returns the 9-tap stride-2 patch tensor (9*Cin, N, out_h, out_w) with
    row order (kh, kw, cin) — matching the (co, kh, kw, ci) weight flattening.
    """
    c, n = xp.shape[0], xp.shape[1]
    taps = [xp[:, :, i:i + 2 * out_h:2, j:j + 2 * out_w:2]
            for i in range(3) for j in range(3)]
    return jnp.stack(taps, axis=0).reshape(9 * c, n, out_h, out_w)


def res_block_forward(x_nchw, params, *, compute_dtype=jnp.bfloat16,
                      batch_block=1):
    """ResBlock forward. Input/Output NCHW (N, Cin, H, W) -> (N, Cout, H/2, W/2)."""
    (W1, b1, g1, be1, m1, v1,
     W2, b2, g2, be2, m2, v2,
     Wa, ba, ga, bea, ma, va) = params

    N, Cin, H, W = x_nchw.shape
    Cout = W1.shape[0]
    if Cout % 8 != 0:  # keeps the y[:Cout]/y[Cout:] row split sublane-aligned
        raise ValueError("Cout must be a multiple of 8")
    if H % 2 or W % 2:
        raise ValueError("even spatial dims expected")
    if N % batch_block:
        raise ValueError("batch_block must divide N")

    Ho, Wo = H // 2, W // 2
    Hp, Wp = Ho + 2, Wo + 2                 # layer-2 padded plane
    P = Hp * Wp                             # flattened plane length per image
    P_pad = pl.cdiv(P, 128) * 128           # lane-aligned per-image length
    tile_cols = batch_block * P_pad         # lane tile per grid step

    # ---- fold BN (inference) into per-channel f32 scale / bias --------------
    s1, b1f = _fold_bn(b1, g1, be1, m1, v1)
    s2, b2f = _fold_bn(b2, g2, be2, m2, v2)
    sa, baf = _fold_bn(ba, ga, bea, ma, va)

    # Weights, channel-major, (co, kh, kw, ci) flattening.  align_layer's
    # stride-2 1x1 conv samples exactly the (kh=1,kw=1) tap of the layer-1
    # patch (because of the top=1,left=1 pad), so it rides along as extra
    # output rows of the first matmul.
    W1t = jnp.transpose(W1, (0, 2, 3, 1)).reshape(Cout, 9 * Cin)
    W2t = jnp.transpose(W2, (0, 2, 3, 1)).reshape(Cout, 9 * Cout)
    Wa_full = jnp.zeros((Cout, 9 * Cin), W1t.dtype)
    Wa_full = Wa_full.at[:, 4 * Cin:5 * Cin].set(Wa[:, :, 0, 0])
    w1a = jnp.concatenate([W1t, Wa_full], axis=0).astype(compute_dtype)
    s1a = jnp.concatenate([s1, sa]).reshape(2 * Cout, 1).astype(jnp.float32)
    b1a = jnp.concatenate([b1f, baf]).reshape(2 * Cout, 1).astype(jnp.float32)
    w2k = W2t.astype(compute_dtype)
    s2k = s2.reshape(Cout, 1).astype(jnp.float32)
    b2k = b2f.reshape(Cout, 1).astype(jnp.float32)

    # ---- layer-1 stride-2 im2col, laid out on the padded layer-2 plane ------
    # TODO(synk): move this gather in-kernel (halo DMA) for production shapes.
    x_cm = jnp.transpose(x_nchw, (1, 0, 2, 3))                  # (Cin, N, H, W)
    x_pad = jnp.pad(x_cm, ((0, 0), (0, 0), (1, 0), (1, 0)))     # top=1, left=1
    p1 = _l1_patches(x_pad, Ho, Wo)                             # (9Cin,N,Ho,Wo)
    p1 = jnp.pad(p1, ((0, 0), (0, 0), (1, 1), (1, 1)))          # zero ring
    p1 = p1.reshape(9 * Cin, N, P)
    p1 = jnp.pad(p1, ((0, 0), (0, 0), (0, P_pad - P)))          # lane alignment
    p1 = p1.reshape(9 * Cin, N * P_pad).astype(compute_dtype)

    # interior-column mask (1 = real output position, 0 = border / pad)
    col = jnp.arange(P_pad)
    r, c = col // Wp, col % Wp
    valid = (col < P) & (r >= 1) & (r <= Ho) & (c >= 1) & (c <= Wo)
    mask = jnp.tile(valid.astype(jnp.float32), (N,)).reshape(1, N * P_pad)

    # tap shifts on the flattened plane (see kernel docstring)
    shifts = tuple(int((-((kh - 1) * Wp + (kw - 1))) % tile_cols)
                   for kh in range(3) for kw in range(3))

    kernel = functools.partial(_resblock_kernel, cout=Cout, shifts=shifts)
    out_flat = pl.pallas_call(
        kernel,
        out_shape=jax.ShapeDtypeStruct((Cout, N * P_pad), jnp.float32),
        grid=(N // batch_block,),
        in_specs=[
            pl.BlockSpec((9 * Cin, tile_cols), lambda i: (0, i)),
            pl.BlockSpec((1, tile_cols), lambda i: (0, i)),
            pl.BlockSpec((2 * Cout, 9 * Cin), lambda i: (0, 0)),   # resident
            pl.BlockSpec((2 * Cout, 1), lambda i: (0, 0)),         # resident
            pl.BlockSpec((2 * Cout, 1), lambda i: (0, 0)),         # resident
            pl.BlockSpec((Cout, 9 * Cout), lambda i: (0, 0)),      # resident
            pl.BlockSpec((Cout, 1), lambda i: (0, 0)),             # resident
            pl.BlockSpec((Cout, 1), lambda i: (0, 0)),             # resident
        ],
        out_specs=pl.BlockSpec((Cout, tile_cols), lambda i: (0, i)),
        compiler_params=pltpu.CompilerParams(
            dimension_semantics=("parallel",),
            vmem_limit_bytes=_VMEM_LIMIT),
    )(p1, mask, w1a, s1a, b1a, w2k, s2k, b2k)

    # strip lane-alignment columns and the plane border, back to NCHW
    out = out_flat.reshape(Cout, N, P_pad)[:, :, :P]
    out = out.reshape(Cout, N, Hp, Wp)[:, :, 1:1 + Ho, 1:1 + Wo]
    return jnp.transpose(out, (1, 0, 2, 3))


# ------------------------- pure-JAX reference (check) -----------------------

def _conv_ref(x, w, b, stride, padding):
    y = jax.lax.conv_general_dilated(
        x, w, (stride, stride), padding,
        dimension_numbers=("NCHW", "OIHW", "NCHW"))
    return y + b.reshape(1, -1, 1, 1)


def _bn_ref(x, gamma, beta, mean, var, eps=1e-5):
    r = lambda t: t.reshape(1, -1, 1, 1)
    return r(gamma) * (x - r(mean)) / jnp.sqrt(r(var) + eps) + r(beta)


def res_block_reference(x, params):
    (W1, b1, g1, be1, m1, v1,
     W2, b2, g2, be2, m2, v2,
     Wa, ba, ga, bea, ma, va) = params
    residual = _bn_ref(_conv_ref(x, Wa, ba, 2, "VALID"), ga, bea, ma, va)
    xpad = jnp.pad(x, ((0, 0), (0, 0), (1, 0), (1, 0)))          # top=1, left=1
    out = jax.nn.relu(_bn_ref(_conv_ref(xpad, W1, b1, 2, "VALID"),
                              g1, be1, m1, v1))
    out = _bn_ref(_conv_ref(out, W2, b2, 1, [(1, 1), (1, 1)]), g2, be2, m2, v2)
    return jax.nn.relu(out + residual)


# ---------------------------------- main -------------------------------------

if __name__ == "__main__":
    N, Cin, H, W = 2, 4, 32, 32
    Cout = 8

    key = jax.random.PRNGKey(0)
    ks = jax.random.split(key, 10)

    def bn_params(k):
        k1, k2, k3, k4 = jax.random.split(k, 4)
        gamma = 1.0 + 0.1 * jax.random.normal(k1, (Cout,))
        beta = 0.1 * jax.random.normal(k2, (Cout,))
        mean = 0.1 * jax.random.normal(k3, (Cout,))
        var = jax.random.uniform(k4, (Cout,), minval=0.5, maxval=1.5)
        return gamma, beta, mean, var

    W1 = 0.1 * jax.random.normal(ks[0], (Cout, Cin, 3, 3), jnp.float32)
    b1 = 0.1 * jax.random.normal(ks[1], (Cout,), jnp.float32)
    g1, be1, m1, v1 = bn_params(ks[2])

    W2 = 0.1 * jax.random.normal(ks[3], (Cout, Cout, 3, 3), jnp.float32)
    b2 = 0.1 * jax.random.normal(ks[4], (Cout,), jnp.float32)
    g2, be2, m2, v2 = bn_params(ks[5])

    Wa = 0.1 * jax.random.normal(ks[6], (Cout, Cin, 1, 1), jnp.float32)
    ba = 0.1 * jax.random.normal(ks[7], (Cout,), jnp.float32)
    ga, bea, ma, va = bn_params(ks[8])

    params = (W1, b1, g1, be1, m1, v1,
              W2, b2, g2, be2, m2, v2,
              Wa, ba, ga, bea, ma, va)

    x = jax.random.normal(ks[9], (N, Cin, H, W), jnp.float32)

    ref = jax.block_until_ready(res_block_reference(x, params))

    # 1) f32 MXU operands: tight structural check (fusion / BN fold / in-kernel
    #    tap gather / plane bookkeeping).
    out_f32 = jax.block_until_ready(
        res_block_forward(x, params, compute_dtype=jnp.float32))
    assert out_f32.shape == (N, Cout, H // 2, W // 2), out_f32.shape
    assert jnp.allclose(out_f32, ref, atol=2e-4, rtol=2e-4), float(
        jnp.max(jnp.abs(out_f32 - ref)))

    # 2) larger column tile (both images in one grid step) — exercises the
    #    tile-size knob from the review.
    out_f32b = jax.block_until_ready(
        res_block_forward(x, params, compute_dtype=jnp.float32, batch_block=2))
    assert jnp.allclose(out_f32b, ref, atol=2e-4, rtol=2e-4), float(
        jnp.max(jnp.abs(out_f32b - ref)))

    # 3) bf16 MXU operands (production default on v6e/v7x); the f32 path above
    #    already asserts the structure exactly, so only a loose tolerance here.
    out_bf16 = jax.block_until_ready(
        res_block_forward(x, params, compute_dtype=jnp.bfloat16))
    assert jnp.allclose(out_bf16, ref, atol=5e-2, rtol=5e-2), float(
        jnp.max(jnp.abs(out_bf16 - ref)))

    print("KERNEL_OK")
</pallas_src>

<mosaic_0001>
module attributes {stable_mosaic.version = 11 : i64} {
  func.func @_resblock_kernel(%arg0: i32, %arg1: memref<36x384xf32, #tpu.memory_space<vmem>>, %arg2: memref<1x384xf32, #tpu.memory_space<vmem>>, %arg3: memref<16x36xf32, #tpu.memory_space<vmem>>, %arg4: memref<16x1xf32, #tpu.memory_space<vmem>>, %arg5: memref<16x1xf32, #tpu.memory_space<vmem>>, %arg6: memref<8x72xf32, #tpu.memory_space<vmem>>, %arg7: memref<8x1xf32, #tpu.memory_space<vmem>>, %arg8: memref<8x1xf32, #tpu.memory_space<vmem>>, %arg9: memref<8x384xf32, #tpu.memory_space<vmem>>) attributes {dimension_semantics = [#tpu.dimension_semantics<parallel>], iteration_bounds = array<i64: 2>, scalar_prefetch = 0 : i64, scratch_operands = 0 : i64, tpu.core_type = #tpu.core_type<tc>, window_params = [{transform_indices = @transform_0, window_bounds = array<i64: 36, 384>}, {transform_indices = @transform_1, window_bounds = array<i64: 1, 384>}, {pipeline_mode = #tpu.pipeline_mode<synchronous>, transform_indices = @transform_2, window_bounds = array<i64: 16, 36>}, {pipeline_mode = #tpu.pipeline_mode<synchronous>, transform_indices = @transform_3, window_bounds = array<i64: 16, 1>}, {pipeline_mode = #tpu.pipeline_mode<synchronous>, transform_indices = @transform_4, window_bounds = array<i64: 16, 1>}, {pipeline_mode = #tpu.pipeline_mode<synchronous>, transform_indices = @transform_5, window_bounds = array<i64: 8, 72>}, {pipeline_mode = #tpu.pipeline_mode<synchronous>, transform_indices = @transform_6, window_bounds = array<i64: 8, 1>}, {pipeline_mode = #tpu.pipeline_mode<synchronous>, transform_indices = @transform_7, window_bounds = array<i64: 8, 1>}, {transform_indices = @transform_8, window_bounds = array<i64: 8, 384>}]} {
    %c0 = arith.constant 0 : index
    %c0_0 = arith.constant 0 : index
    %0 = vector.load %arg3[%c0, %c0_0] : memref<16x36xf32, #tpu.memory_space<vmem>>, vector<16x36xf32>
    %c0_1 = arith.constant 0 : index
    %c0_2 = arith.constant 0 : index
    %1 = vector.load %arg1[%c0_1, %c0_2] : memref<36x384xf32, #tpu.memory_space<vmem>>, vector<36x384xf32>
    %cst = arith.constant dense<0.000000e+00> : vector<16x384xf32>
    %2 = tpu.matmul %0, %1, %cst {dimension_numbers = #tpu.dot_dimension_numbers<[1], [0], [0], [1], [0, 0, 1, 1], [], []>} : vector<16x36xf32>, vector<36x384xf32>, vector<16x384xf32> -> vector<16x384xf32>
    %c0_3 = arith.constant 0 : index
    %c0_4 = arith.constant 0 : index
    %3 = vector.load %arg4[%c0_3, %c0_4] : memref<16x1xf32, #tpu.memory_space<vmem>>, vector<16x1xf32>
    %4 = vector.broadcast %3 : vector<16x1xf32> to vector<16x384xf32>
    %5 = arith.mulf %2, %4 : vector<16x384xf32>
    %c0_5 = arith.constant 0 : index
    %c0_6 = arith.constant 0 : index
    %6 = vector.load %arg5[%c0_5, %c0_6] : memref<16x1xf32, #tpu.memory_space<vmem>>, vector<16x1xf32>
    %7 = vector.broadcast %6 : vector<16x1xf32> to vector<16x384xf32>
    %8 = arith.addf %5, %7 : vector<16x384xf32>
    %9 = vector.extract_strided_slice %8 {offsets = [0, 0], sizes = [8, 384], strides = [1, 1]} : vector<16x384xf32> to vector<8x384xf32>
    %cst_7 = arith.constant 0.000000e+00 : f32
    %10 = vector.broadcast %cst_7 : f32 to vector<8x384xf32>
    %11 = arith.maximumf %9, %10 : vector<8x384xf32>
    %c0_8 = arith.constant 0 : index
    %c0_9 = arith.constant 0 : index
    %12 = vector.load %arg2[%c0_8, %c0_9] : memref<1x384xf32, #tpu.memory_space<vmem>>, vector<1x384xf32>
    %13 = vector.broadcast %12 : vector<1x384xf32> to vector<8x384xf32>
    %14 = arith.mulf %11, %13 : vector<8x384xf32>
    %15 = vector.extract_strided_slice %8 {offsets = [8, 0], sizes = [8, 384], strides = [1, 1]} : vector<16x384xf32> to vector<8x384xf32>
    %c19_i32 = arith.constant 19 : i32
    %16 = tpu.dynamic_rotate %14 by %c19_i32 dim 1 : vector<8x384xf32>, i32 -> vector<8x384xf32>
    %c18_i32 = arith.constant 18 : i32
    %17 = tpu.dynamic_rotate %14 by %c18_i32 dim 1 : vector<8x384xf32>, i32 -> vector<8x384xf32>
    %c17_i32 = arith.constant 17 : i32
    %18 = tpu.dynamic_rotate %14 by %c17_i32 dim 1 : vector<8x384xf32>, i32 -> vector<8x384xf32>
    %c1_i32 = arith.constant 1 : i32
    %19 = tpu.dynamic_rotate %14 by %c1_i32 dim 1 : vector<8x384xf32>, i32 -> vector<8x384xf32>
    %c383_i32 = arith.constant 383 : i32
    %20 = tpu.dynamic_rotate %14 by %c383_i32 dim 1 : vector<8x384xf32>, i32 -> vector<8x384xf32>
    %c367_i32 = arith.constant 367 : i32
    %21 = tpu.dynamic_rotate %14 by %c367_i32 dim 1 : vector<8x384xf32>, i32 -> vector<8x384xf32>
    %c366_i32 = arith.constant 366 : i32
    %22 = tpu.dynamic_rotate %14 by %c366_i32 dim 1 : vector<8x384xf32>, i32 -> vector<8x384xf32>
    %c365_i32 = arith.constant 365 : i32
    %23 = tpu.dynamic_rotate %14 by %c365_i32 dim 1 : vector<8x384xf32>, i32 -> vector<8x384xf32>
    %24 = tpu.concatenate %16, %17, %18, %19, %14, %20, %21, %22, %23 in 0 : vector<8x384xf32>, vector<8x384xf32>, vector<8x384xf32>, vector<8x384xf32>, vector<8x384xf32>, vector<8x384xf32>, vector<8x384xf32>, vector<8x384xf32>, vector<8x384xf32> -> vector<72x384xf32>
    %c0_10 = arith.constant 0 : index
    %c0_11 = arith.constant 0 : index
    %25 = vector.load %arg6[%c0_10, %c0_11] : memref<8x72xf32, #tpu.memory_space<vmem>>, vector<8x72xf32>
    %cst_12 = arith.constant dense<0.000000e+00> : vector<8x384xf32>
    %26 = tpu.matmul %25, %24, %cst_12 {dimension_numbers = #tpu.dot_dimension_numbers<[1], [0], [0], [1], [0, 0, 1, 1], [], []>} : vector<8x72xf32>, vector<72x384xf32>, vector<8x384xf32> -> vector<8x384xf32>
    %c0_13 = arith.constant 0 : index
    %c0_14 = arith.constant 0 : index
    %27 = vector.load %arg7[%c0_13, %c0_14] : memref<8x1xf32, #tpu.memory_space<vmem>>, vector<8x1xf32>
    %28 = vector.broadcast %27 : vector<8x1xf32> to vector<8x384xf32>
    %29 = arith.mulf %26, %28 : vector<8x384xf32>
    %c0_15 = arith.constant 0 : index
    %c0_16 = arith.constant 0 : index
    %30 = vector.load %arg8[%c0_15, %c0_16] : memref<8x1xf32, #tpu.memory_space<vmem>>, vector<8x1xf32>
    %31 = vector.broadcast %30 : vector<8x1xf32> to vector<8x384xf32>
    %32 = arith.addf %29, %31 : vector<8x384xf32>
    %33 = arith.addf %32, %15 : vector<8x384xf32>
    %cst_17 = arith.constant 0.000000e+00 : f32
    %34 = vector.broadcast %cst_17 : f32 to vector<8x384xf32>
    %35 = arith.maximumf %33, %34 : vector<8x384xf32>
    %c0_18 = arith.constant 0 : index
    %c0_19 = arith.constant 0 : index
    %36 = vector.load %arg9[%c0_18, %c0_19] : memref<8x384xf32, #tpu.memory_space<vmem>>, vector<8x384xf32>
    tpu.vector_store %arg9[%c0_18, %c0_19], %35 {strides = array<i32>} : memref<8x384xf32, #tpu.memory_space<vmem>>, vector<8x384xf32>,
    return
  }
  func.func @transform_0(%arg0: i32) -> (i32, i32) {
    %c0_i32 = arith.constant 0 : i32
    %c0_i32_0 = arith.constant 0 : i32
    return %c0_i32, %arg0 : i32, i32
  }
  func.func @transform_1(%arg0: i32) -> (i32, i32) {
    %c0_i32 = arith.constant 0 : i32
    %c0_i32_0 = arith.constant 0 : i32
    return %c0_i32, %arg0 : i32, i32
  }
  func.func @transform_2(%arg0: i32) -> (i32, i32) {
    %c0_i32 = arith.constant 0 : i32
    %c0_i32_0 = arith.constant 0 : i32
    %c0_i32_1 = arith.constant 0 : i32
    return %c0_i32, %c0_i32_0 : i32, i32
  }
  func.func @transform_3(%arg0: i32) -> (i32, i32) {
    %c0_i32 = arith.constant 0 : i32
    %c0_i32_0 = arith.constant 0 : i32
    %c0_i32_1 = arith.constant 0 : i32
    return %c0_i32, %c0_i32_0 : i32, i32
  }
  func.func @transform_4(%arg0: i32) -> (i32, i32) {
    %c0_i32 = arith.constant 0 : i32
    %c0_i32_0 = arith.constant 0 : i32
    %c0_i32_1 = arith.constant 0 : i32
    return %c0_i32, %c0_i32_0 : i32, i32
  }
  func.func @transform_5(%arg0: i32) -> (i32, i32) {
    %c0_i32 = arith.constant 0 : i32
    %c0_i32_0 = arith.constant 0 : i32
    %c0_i32_1 = arith.constant 0 : i32
    return %c0_i32, %c0_i32_0 : i32, i32
  }
  func.func @transform_6(%arg0: i32) -> (i32, i32) {
    %c0_i32 = arith.constant 0 : i32
    %c0_i32_0 = arith.constant 0 : i32
    %c0_i32_1 = arith.constant 0 : i32
    return %c0_i32, %c0_i32_0 : i32, i32
  }
  func.func @transform_7(%arg0: i32) -> (i32, i32) {
    %c0_i32 = arith.constant 0 : i32
    %c0_i32_0 = arith.constant 0 : i32
    %c0_i32_1 = arith.constant 0 : i32
    return %c0_i32, %c0_i32_0 : i32, i32
  }
  func.func @transform_8(%arg0: i32) -> (i32, i32) {
    %c0_i32 = arith.constant 0 : i32
    %c0_i32_0 = arith.constant 0 : i32
    return %c0_i32, %arg0 : i32, i32
  }
}

</mosaic_0001>

<llo_original>
// kernel: tpu_custom_call.1
$region0: #{tpu_custom_call.1}
  #allocation0 [shape = 'u32[]', space=smem, size = 0x4, offset = 0x4, fixed_abs, tag = 'smem constant byte address 0x4 - core index']
  #allocation1 [shape = 'u32[144,128]{1,0:T(1,128)}', space=vmem, size = 0x12000, scoped, tag = 'internal scratch']
  %s0 = inlined_call_operand.hbm [shape: f32[36,768], index: 0, kind: input, shape index: {}]
  %s1 = inlined_call_operand.vmem [shape: f32[1,768], index: 1, kind: input, shape index: {}]
  %s2 = inlined_call_operand.vmem [shape: f32[16,36], index: 2, kind: input, shape index: {}]
  %s3 = inlined_call_operand.vmem [shape: f32[16,1], index: 3, kind: input, shape index: {}]
  %s4 = inlined_call_operand.vmem [shape: f32[16,1], index: 4, kind: input, shape index: {}]
  %s5 = inlined_call_operand.vmem [shape: f32[8,72], index: 5, kind: input, shape index: {}]
  %s6 = inlined_call_operand.vmem [shape: f32[8,1], index: 6, kind: input, shape index: {}]
  %s7 = inlined_call_operand.vmem [shape: f32[8,1], index: 7, kind: input, shape index: {}]
  %s8 = inlined_call_operand.hbm [shape: f32[8,768], index: 8, kind: output, shape index: {}]
  %s9 = sld [smem:[#allocation0]]
  $region69: #{tpu_custom_call.1} parent=0
    _
  %s11 = ssub.s32 1, %s9
  %s12 = scalar_select 0, %s11, %s9
  $region1: #{tpu_custom_call.1} parent=0
    #allocation2 [shape = 'u8[122880]{0}', space=vmem, size = 0x1e000, scoped, tag = 'input window, operand 0']
    #allocation3 [shape = 's32[2]{0}', space=sflag, size = 0x8, scoped, tag = 'scoped memory for tpu_custom_call.1']
    #allocation4 [shape = 's32[2]{0}', space=sflag, size = 0x8, scoped, tag = 'scoped memory for tpu_custom_call.1']
    #allocation5 [shape = 'u8[24576]{0}', space=vmem, size = 0x6000, scoped, tag = 'output window, operand 0']
    %13 = vsyncpa [#allocation3], 0
    %s14 = scalar_lea.sflag [#allocation3], 1
    %15 = vsyncpa %s14, 0
    %16 = vsyncpa [#allocation4], 0
    %s17 = scalar_lea.sflag [#allocation4], 1
    %18 = vsyncpa %s17, 0
    loop: start=0, step=1, limit=4
    $region2: #{tpu_custom_call.1} parent=1 // loop_pre_header
      _
    $region3: #{tpu_custom_call.1} parent=1 // loop_header
      %s20 = sphi 0, %s24
      %p21 = scmp.ge.s32.totalorder %s20, 4
      %s30 = sphi 0, %s32
      %s33 = sphi 0, %s30
      %s34 = sphi 0, %s33
      %s50 = sphi 0, %s34
      %s56 = sphi 0, %s58
      %s59 = sphi 0, %s56
      %s60 = sphi 0, %s59
      %s76 = sphi 0, %s60
      %s80 = sphi 0, %s80
      %s82 = sphi 0, %s80
      %s83 = sphi 0, %s82
      %s97 = sphi 0, %s83
      %s101 = sphi 0, %s101
      %s103 = sphi 0, %s101
      %s104 = sphi 0, %s103
      %s118 = sphi 0, %s104
      %s122 = sphi 0, %s122
      %s124 = sphi 0, %s122
      %s125 = sphi 0, %s124
      %s139 = sphi 0, %s125
      %s143 = sphi 0, %s143
      %s145 = sphi 0, %s143
      %s146 = sphi 0, %s145
      %s160 = sphi 0, %s146
      %s164 = sphi 0, %s164
      %s166 = sphi 0, %s164
      %s167 = sphi 0, %s166
      %s181 = sphi 0, %s167
      %s185 = sphi 0, %s185
      %s187 = sphi 0, %s185
      %s188 = sphi 0, %s187
      %s202 = sphi 0, %s188
      %s208 = sphi 0, %s210
      %s211 = sphi 0, %s208
      %s212 = sphi 0, %s211
      %s228 = sphi 0, %s212
    $region4: #{tpu_custom_call.1} parent=1 // loop_header_branch
      %23 = sbr.rel (%p21) target = $region8
    $region5: #{tpu_custom_call.1} parent=1 // loop_body
      %s25 = ssub.s32 %s20, 1
      %s26 = ssub.s32 %s20, 2
      %s27 = sadd.s32 %s20, 1
      %s28 = ssub.s32 %s20, %s27
      %p29 = scmp.eq.s32.totalorder %s28, 0
      %s31 = sadd.s32 %s30, 1
      %s32 = scalar_select %p29, %s30, %s31
      %p35 = pneg %p29
      %p36 = scmp.eq.s32.totalorder %s20, 1
      %p37 = por %p35, %p36
      %p38 = scmp.ne.s32.totalorder %s30, %s33
      %p39 = scmp.eq.s32.totalorder %s20, 0
      %p40 = por %p38, %p39
      %p41 = scmp.ne.s32.totalorder %s30, %s33
      %p42 = scmp.eq.s32.totalorder %s25, 1
      %p43 = por %p41, %p42
      %p44 = scmp.ne.s32.totalorder %s33, %s34
      %p45 = scmp.eq.s32.totalorder %s25, 0
      %p46 = por %p44, %p45
      %p47 = scmp.ne.s32.totalorder %s33, %s34
      %p48 = scmp.eq.s32.totalorder %s26, 1
      %p49 = por %p47, %p48
      %p51 = scmp.ne.s32.totalorder %s34, %s50
      %p52 = scmp.eq.s32.totalorder %s26, 0
      %p53 = por %p51, %p52
      %s54 = ssub.s32 %s20, %s27
      %p55 = scmp.eq.s32.totalorder %s54, 0
      %s57 = sadd.s32 %s56, 1
      %s58 = scalar_select %p55, %s56, %s57
      %p61 = pneg %p55
      %p62 = scmp.eq.s32.totalorder %s20, 1
      %p63 = por %p61, %p62
      %p64 = scmp.ne.s32.totalorder %s56, %s59
      %p65 = scmp.eq.s32.totalorder %s20, 0
      %p66 = por %p64, %p65
      %p67 = scmp.ne.s32.totalorder %s56, %s59
      %p68 = scmp.eq.s32.totalorder %s25, 1
      %p69 = por %p67, %p68
      %p70 = scmp.ne.s32.totalorder %s59, %s60
      %p71 = scmp.eq.s32.totalorder %s25, 0
      %p72 = por %p70, %p71
      %p73 = scmp.ne.s32.totalorder %s59, %s60
      %p74 = scmp.eq.s32.totalorder %s26, 1
      %p75 = por %p73, %p74
      %p77 = scmp.ne.s32.totalorder %s60, %s76
      %p78 = scmp.eq.s32.totalorder %s26, 0
      %p79 = por %p77, %p78
      %s81 = sadd.s32 %s80, 1
      %p84 = scmp.eq.s32.totalorder %s20, 1
      %p85 = scmp.ne.s32.totalorder %s80, %s82
      %p86 = scmp.eq.s32.totalorder %s20, 0
      %p87 = por %p85, %p86
      %p88 = scmp.ne.s32.totalorder %s80, %s82
      %p89 = scmp.eq.s32.totalorder %s25, 1
      %p90 = por %p88, %p89
      %p91 = scmp.ne.s32.totalorder %s82, %s83
      %p92 = scmp.eq.s32.totalorder %s25, 0
      %p93 = por %p91, %p92
      %p94 = scmp.ne.s32.totalorder %s82, %s83
      %p95 = scmp.eq.s32.totalorder %s26, 1
      %p96 = por %p94, %p95
      %p98 = scmp.ne.s32.totalorder %s83, %s97
      %p99 = scmp.eq.s32.totalorder %s26, 0
      %p100 = por %p98, %p99
      %s102 = sadd.s32 %s101, 1
      %p105 = scmp.eq.s32.totalorder %s20, 1
      %p106 = scmp.ne.s32.totalorder %s101, %s103
      %p107 = scmp.eq.s32.totalorder %s20, 0
      %p108 = por %p106, %p107
      %p109 = scmp.ne.s32.totalorder %s101, %s103
      %p110 = scmp.eq.s32.totalorder %s25, 1
      %p111 = por %p109, %p110
      %p112 = scmp.ne.s32.totalorder %s103, %s104
      %p113 = scmp.eq.s32.totalorder %s25, 0
      %p114 = por %p112, %p113
      %p115 = scmp.ne.s32.totalorder %s103, %s104
      %p116 = scmp.eq.s32.totalorder %s26, 1
      %p117 = por %p115, %p116
      %p119 = scmp.ne.s32.totalorder %s104, %s118
      %p120 = scmp.eq.s32.totalorder %s26, 0
      %p121 = por %p119, %p120
      %s123 = sadd.s32 %s122, 1
      %p126 = scmp.eq.s32.totalorder %s20, 1
      %p127 = scmp.ne.s32.totalorder %s122, %s124
      %p128 = scmp.eq.s32.totalorder %s20, 0
      %p129 = por %p127, %p128
      %p130 = scmp.ne.s32.totalorder %s122, %s124
      %p131 = scmp.eq.s32.totalorder %s25, 1
      %p132 = por %p130, %p131
      %p133 = scmp.ne.s32.totalorder %s124, %s125
      %p134 = scmp.eq.s32.totalorder %s25, 0
      %p135 = por %p133, %p134
      %p136 = scmp.ne.s32.totalorder %s124, %s125
      %p137 = scmp.eq.s32.totalorder %s26, 1
      %p138 = por %p136, %p137
      %p140 = scmp.ne.s32.totalorder %s125, %s139
      %p141 = scmp.eq.s32.totalorder %s26, 0
      %p142 = por %p140, %p141
      %s144 = sadd.s32 %s143, 1
      %p147 = scmp.eq.s32.totalorder %s20, 1
      %p148 = scmp.ne.s32.totalorder %s143, %s145
      %p149 = scmp.eq.s32.totalorder %s20, 0
      %p150 = por %p148, %p149
      %p151 = scmp.ne.s32.totalorder %s143, %s145
      %p152 = scmp.eq.s32.totalorder %s25, 1
      %p153 = por %p151, %p152
      %p154 = scmp.ne.s32.totalorder %s145, %s146
      %p155 = scmp.eq.s32.totalorder %s25, 0
      %p156 = por %p154, %p155
      %p157 = scmp.ne.s32.totalorder %s145, %s146
      %p158 = scmp.eq.s32.totalorder %s26, 1
      %p159 = por %p157, %p158
      %p161 = scmp.ne.s32.totalorder %s146, %s160
      %p162 = scmp.eq.s32.totalorder %s26, 0
      %p163 = por %p161, %p162
      %s165 = sadd.s32 %s164, 1
      %p168 = scmp.eq.s32.totalorder %s20, 1
      %p169 = scmp.ne.s32.totalorder %s164, %s166
      %p170 = scmp.eq.s32.totalorder %s20, 0
      %p171 = por %p169, %p170
      %p172 = scmp.ne.s32.totalorder %s164, %s166
      %p173 = scmp.eq.s32.totalorder %s25, 1
      %p174 = por %p172, %p173
      %p175 = scmp.ne.s32.totalorder %s166, %s167
      %p176 = scmp.eq.s32.totalorder %s25, 0
      %p177 = por %p175, %p176
      %p178 = scmp.ne.s32.totalorder %s166, %s167
      %p179 = scmp.eq.s32.totalorder %s26, 1
      %p180 = por %p178, %p179
      %p182 = scmp.ne.s32.totalorder %s167, %s181
      %p183 = scmp.eq.s32.totalorder %s26, 0
      %p184 = por %p182, %p183
      %s186 = sadd.s32 %s185, 1
      %p189 = scmp.eq.s32.totalorder %s20, 1
      %p190 = scmp.ne.s32.totalorder %s185, %s187
      %p191 = scmp.eq.s32.totalorder %s20, 0
      %p192 = por %p190, %p191
      %p193 = scmp.ne.s32.totalorder %s185, %s187
      %p194 = scmp.eq.s32.totalorder %s25, 1
      %p195 = por %p193, %p194
      %p196 = scmp.ne.s32.totalorder %s187, %s188
      %p197 = scmp.eq.s32.totalorder %s25, 0
      %p198 = por %p196, %p197
      %p199 = scmp.ne.s32.totalorder %s187, %s188
      %p200 = scmp.eq.s32.totalorder %s26, 1
      %p201 = por %p199, %p200
      %p203 = scmp.ne.s32.totalorder %s188, %s202
      %p204 = scmp.eq.s32.totalorder %s26, 0
      %p205 = por %p203, %p204
      %s206 = ssub.s32 %s20, %s27
      %p207 = scmp.eq.s32.totalorder %s206, 0
      %s209 = sadd.s32 %s208, 1
      %s210 = scalar_select %p207, %s208, %s209
      %p213 = pneg %p207
      %p214 = scmp.eq.s32.totalorder %s20, 1
      %p215 = por %p213, %p214
      %p216 = scmp.ne.s32.totalorder %s208, %s211
      %p217 = scmp.eq.s32.totalorder %s20, 0
      %p218 = por %p216, %p217
      %p219 = scmp.ne.s32.totalorder %s208, %s211
      %p220 = scmp.eq.s32.totalorder %s25, 1
      %p221 = por %p219, %p220
      %p222 = scmp.ne.s32.totalorder %s211, %s212
      %p223 = scmp.eq.s32.totalorder %s25, 0
      %p224 = por %p222, %p223
      %p225 = scmp.ne.s32.totalorder %s211, %s212
      %p226 = scmp.eq.s32.totalorder %s26, 1
      %p227 = por %p225, %p226
      %p229 = scmp.ne.s32.totalorder %s212, %s228
      %p230 = scmp.eq.s32.totalorder %s26, 0
      %p231 = por %p229, %p230
      %p232 = scmp.le.s32.totalorder 1, %s20
      %p233 = scmp.lt.s32.totalorder %s20, 3
      %p234 = pnand %p232, %p233
      %p235 = pneg %p234
      // Predicated region
      $region9: #{tpu_custom_call.1} parent=5 // pred_check
        _
      $region10: #{tpu_custom_call.1} parent=5 // pred_check_branch
        %237 = sbr.rel (%p234) target = $region12
      $region11: #{tpu_custom_call.1} parent=5 // pred_region
        %s238 = ssub.s32 %s20, 1
        // Predicated region
        $region13: #{tpu_custom_call.1} parent=11 // pred_check
          %p239 = pneg %p93
        $region14: #{tpu_custom_call.1} parent=11 // pred_check_branch
          %241 = sbr.rel (%p239) target = $region16
        $region15: #{tpu_custom_call.1} parent=11 // pred_region
          _
        $region16: #{tpu_custom_call.1} parent=11 // pred_fallthru
          _
        // Predicated region
        $region17: #{tpu_custom_call.1} parent=11 // pred_check
          %p242 = pneg %p114
        $region18: #{tpu_custom_call.1} parent=11 // pred_check_branch
          %244 = sbr.rel (%p242) target = $region20
        $region19: #{tpu_custom_call.1} parent=11 // pred_region
          _
        $region20: #{tpu_custom_call.1} parent=11 // pred_fallthru
          _
        // Predicated region
        $region21: #{tpu_custom_call.1} parent=11 // pred_check
          %p245 = pneg %p135
        $region22: #{tpu_custom_call.1} parent=11 // pred_check_branch
          %247 = sbr.rel (%p245) target = $region24
        $region23: #{tpu_custom_call.1} parent=11 // pred_region
          _
        $region24: #{tpu_custom_call.1} parent=11 // pred_fallthru
          _
        // Predicated region
        $region25: #{tpu_custom_call.1} parent=11 // pred_check
          %p248 = pneg %p156
        $region26: #{tpu_custom_call.1} parent=11 // pred_check_branch
          %250 = sbr.rel (%p248) target = $region28
        $region27: #{tpu_custom_call.1} parent=11 // pred_region
          _
        $region28: #{tpu_custom_call.1} parent=11 // pred_fallthru
          _
        // Predicated region
        $region29: #{tpu_custom_call.1} parent=11 // pred_check
          %p251 = pneg %p177
        $region30: #{tpu_custom_call.1} parent=11 // pred_check_branch
          %253 = sbr.rel (%p251) target = $region32
        $region31: #{tpu_custom_call.1} parent=11 // pred_region
          _
        $region32: #{tpu_custom_call.1} parent=11 // pred_fallthru
          _
        // Predicated region
        $region33: #{tpu_custom_call.1} parent=11 // pred_check
          %p254 = pneg %p198
        $region34: #{tpu_custom_call.1} parent=11 // pred_check_branch
          %256 = sbr.rel (%p254) target = $region36
        $region35: #{tpu_custom_call.1} parent=11 // pred_region
          _
        $region36: #{tpu_custom_call.1} parent=11 // pred_fallthru
          _
      $region12: #{tpu_custom_call.1} parent=5 // pred_fallthru
        _
      %p257 = scmp.lt.s32.totalorder %s20, 2
      // Predicated region
      $region37: #{tpu_custom_call.1} parent=5 // pred_check
        %p258 = pneg %p257
      $region38: #{tpu_custom_call.1} parent=5 // pred_check_branch
        %260 = sbr.rel (%p258) target = $region40
      $region39: #{tpu_custom_call.1} parent=5 // pred_region
        // Predicated region
        $region41: #{tpu_custom_call.1} parent=39 // pred_check
          %p261 = pneg %p40
        $region42: #{tpu_custom_call.1} parent=39 // pred_check_branch
          %263 = sbr.rel (%p261) target = $region44
        $region43: #{tpu_custom_call.1} parent=39 // pred_region
          %s264 = sand.u32 %s30, 1
          %s265 = scalar_lea.sflag [#allocation3], %s264
          %s266 = sand.u32 %s30, 1
          %s267 = smul.addr %s266, 120
          %s268 = scalar_lea.vmem [#allocation2], %s267
          %s269 = smul.u32 3, %s20
          %s271 = ssub.s32 1920, 1920
          %272 = vsyncadd %s265, %s271
          %s273 = smul.addr %s269, 128
          %s274 = scalar_lea.hbm %s0, %s273
          %s275 = sshll.u32 %s268, 4
          %s276 = int_to_ptr.vmem [resolvable:$true] %s275
          %281 = dma.hbm_to_vmem [thread:$0]  %s274, 1920, %s276, %s265, 768, 384, 24
        $region44: #{tpu_custom_call.1} parent=39 // pred_fallthru
          _
        // Predicated region
        $region45: #{tpu_custom_call.1} parent=39 // pred_check
          %p282 = pneg %p66
        $region46: #{tpu_custom_call.1} parent=39 // pred_check_branch
          %284 = sbr.rel (%p282) target = $region48
        $region47: #{tpu_custom_call.1} parent=39 // pred_region
          %s285 = smul.u32 3, %s20
          %p286 = scmp.lt.s32.totalorder %s285, 5
          %s287 = scalar_select %p286, %s285, 5
          %s288 = scalar_lea.vmem %s1, %s287
          %s289 = smul.u32 3, %s20
        $region48: #{tpu_custom_call.1} parent=39 // pred_fallthru
          _
      $region40: #{tpu_custom_call.1} parent=5 // pred_fallthru
        _
      %p290 = scmp.le.s32.totalorder 1, %s20
      %p291 = scmp.lt.s32.totalorder %s20, 3
      %p292 = pnand %p290, %p291
      %p293 = pneg %p292
      // Predicated region
      $region49: #{tpu_custom_call.1} parent=5 // pred_check
        _
      $region50: #{tpu_custom_call.1} parent=5 // pred_check_branch
        %295 = sbr.rel (%p292) target = $region52
      $region51: #{tpu_custom_call.1} parent=5 // pred_region
        %s296 = ssub.s32 %s20, 1
        %s297 = sand.u32 %s33, 1
        %s298 = scalar_lea.sflag [#allocation3], %s297
        %s299 = sand.u32 %s33, 1
        %s300 = smul.addr %s299, 120
        %s301 = scalar_lea.vmem [#allocation2], %s300
        // Predicated region
        $region53: #{tpu_custom_call.1} parent=51 // pred_check
          %p302 = pneg %p46
        $region54: #{tpu_custom_call.1} parent=51 // pred_check_branch
          %304 = sbr.rel (%p302) target = $region56
        $region55: #{tpu_custom_call.1} parent=51 // pred_region
          %305 = dma.done %s298, 1920
        $region56: #{tpu_custom_call.1} parent=51 // pred_fallthru
          _
        %s306 = sand.u32 %s33, 1
        %s307 = scalar_lea.sflag [#allocation3], %s306
        %s308 = sand.u32 %s33, 1
        %s309 = smul.addr %s308, 120
        %s310 = scalar_lea.vmem [#allocation2], %s309
        %p311 = pneg %p46
        %p312 = pneg %p43
        %s313 = smul.u32 3, %s25
        %p314 = scmp.lt.s32.totalorder %s313, 5
        %s315 = scalar_select %p314, %s313, 5
        %s316 = scalar_lea.vmem %s1, %s315
        %p317 = pneg %p72
        %p318 = pneg %p69
        %p319 = pneg %p93
        %p320 = pneg %p90
        %p321 = pneg %p114
        %p322 = pneg %p111
        %p323 = pneg %p135
        %p324 = pneg %p132
        %p325 = pneg %p156
        %p326 = pneg %p153
        %p327 = pneg %p177
        %p328 = pneg %p174
        %p329 = pneg %p198
        %p330 = pneg %p195
        %p331 = pneg %p224
        %p332 = pneg %p221
        %s333 = sand.u32 %s211, 1
        %s334 = scalar_lea.sflag [#allocation4], %s333
        %s335 = sand.u32 %s211, 1
        %s336 = smul.addr %s335, 24
        %s337 = scalar_lea.vmem [#allocation5], %s336
        %s338 = smul.u32 3, %s25
        %s339 = smul.u32 3, %s25
        %p340 = scmp.lt.s32.totalorder %s339, 5
        %s341 = scalar_select %p340, %s339, 5
        %s342 = scalar_lea.vmem %s1, %s341
        %s343 = smul.u32 3, %s25
        %s344 = smul.u32 3, %s25
        %v345 = vld [vmem:[%s2] sm:$0xff]
        %v346 = vld [vmem:[%s2 + $0x8] sm:$0xff]
        %v347 = vld [vmem:[%s301] sm:$0xff]
        %v348 = vld [vmem:[%s301 + $0x8] sm:$0xff]
        %v349 = vld [vmem:[%s301 + $0x10] sm:$0xff]
        %v350 = vld [vmem:[%s301 + $0x18] sm:$0xff]
        %v351 = vld [vmem:[%s301 + $0x20] sm:$0xff]
        %v352 = vld [vmem:[%s301 + $0x28] sm:$0xff]
        %v353 = vld [vmem:[%s301 + $0x30] sm:$0xff]
        %v354 = vld [vmem:[%s301 + $0x38] sm:$0xff]
        %v355 = vld [vmem:[%s301 + $0x40] sm:$0xff]
        %v356 = vld [vmem:[%s301 + $0x48] sm:$0xff]
        %v357 = vld [vmem:[%s301 + $0x50] sm:$0xff]
        %v358 = vld [vmem:[%s301 + $0x58] sm:$0xff]
        %v359 = vld [vmem:[%s301 + $0x60] sm:$0xf]
        %v360 = vld [vmem:[%s301 + $0x68] sm:$0xf]
        %v361 = vld [vmem:[%s301 + $0x70] sm:$0xf]
        %vm362 = vcmask 293888
        %v364 = vsel %vm362, %v345, 0
        %v367 = vsel %vm362, %v346, 0
        %vm369 = vcmask 1043456
        %v371 = vsel %vm369, %v359, 0
        %v374 = vsel %vm369, %v360, 0
        %v377 = vsel %vm369, %v361, 0
        %379 = vmatprep.subr.mxu0 %v348
        %380 = vmatpush1.msra.mxu0 %v347
        %381 = vmatprep.subr.mxu0 %v351
        %382 = vmatpush1.msra.mxu0 %v350
        %383 = vmatprep.subr.mxu0 %v354
        %384 = vmatpush1.msra.mxu0 %v353
        %385 = vmatprep.subr.mxu0 %v357
        %386 = vmatpush1.msra.mxu0 %v356
        %387 = vmatprep.subr.mxu0 %v374
        %388 = vmatpush1.msra.mxu0 %v371
        %389 = vmatprep.subr.mxu0 0.0
        %390 = vmatpush1.msra.mxu0 0.0
        %391 = vmatprep.subr.mxu0 0.0
        %392 = vmatpush1.msra.mxu0 0.0
        %393 = vmatprep.subr.mxu0 0.0
        %394 = vmatpush1.msra.mxu0 0.0
        %395 = vmatprep.subr.mxu0 0.0
        %396 = vmatpush1.msra.mxu0 0.0
        %397 = vmatprep.subr.mxu0 0.0
        %398 = vmatpush1.msra.mxu0 0.0
        %399 = vmatprep.subr.mxu0 0.0
        %400 = vmatpush1.msra.mxu0 0.0
        %401 = vmatprep.subr.mxu0 0.0
        %402 = vmatpush1.msra.mxu0 0.0
        %403 = vmatprep.subr.mxu0 0.0
        %404 = vmatpush1.msra.mxu0 0.0
        %405 = vmatprep.subr.mxu0 0.0
        %406 = vmatpush1.msra.mxu0 0.0
        %407 = vmatprep.subr.mxu0 0.0
        %408 = vmatpush1.msra.mxu0 0.0
        %409 = vmatprep.subr.mxu0 0.0
        %410 = vmatpush1.msra.mxu0 0.0
        %411 = vmatprep.subr.mxu0 0.0
        %412 = vmatpush1.msra.mxu0 0.0
        %413 = vmatprep.subr.mxu0 0.0
        %414 = vmatpush1.msra.mxu0 0.0
        %415 = vmatprep.subr.mxu0 0.0
        %416 = vmatpush1.msra.mxu0 0.0
        %417 = vmatprep.subr.mxu0 0.0
        %418 = vmatpush1.msra.mxu0 0.0
        %419 = vmatprep.subr.mxu0 0.0
        %420 = vmatpush1.msra.mxu0 0.0
        %421 = vmatprep.subr.mxu0 0.0
        %422 = vmatpush1.msra.mxu0 0.0
        %423 = vmatprep.subr.mxu0 0.0
        %424 = vmatpush1.msra.mxu0 0.0
        %425 = vmatprep.subr.mxu0 0.0
        %426 = vmatpush1.msra.mxu0 0.0
        %427 = vmatprep.subr.mxu0 0.0
        %428 = vmatpush1.msra.mxu0 0.0
        %429 = vmatprep.subr.mxu0 0.0
        %430 = vmatpush1.msra.mxu0 0.0
        %431 = vmatprep.subr.mxu0 0.0
        %432 = vmatpush1.msra.mxu0 0.0
        %433 = vmatprep.subr.mxu0 0.0
        %434 = vmatpush1.msra.mxu0 0.0
        %435 = vmatprep.subr.mxu0 0.0
        %436 = vmatpush1.msra.mxu0 0.0
        %437 = vmatprep.subr.mxu0 0.0
        %438 = vmatpush1.msra.mxu0 0.0
        %439 = vmatprep.subr.mxu0 0.0
        %440 = vmatpush1.msra.mxu0 0.0
        %441 = vmatprep.subr.mxu0 0.0
        %442 = vmatpush1.msra.mxu0 0.0
        %443 = vmatprep.mubr.f32.mxu0 0.0
        %444 = vmatmul.mubr.f32.gmra.mrb[0].mxu0 %v364
        %v445 = vpop.f32.mrb[0].mxu0
        %v446 = vadd.f32 0.0, %v445
        %v447 = vpop.f32.mrb[0].mxu0
        %v448 = vadd.f32 0.0, %v447
        %449 = vmatprep.mubr.f32.mxu0 0.0
        %450 = vmatmul.mubr.f32.gmra.mrb[0].mxu0 %v367
        %v451 = vpop.f32.mrb[0].mxu0
        %v452 = vadd.f32 0.0, %v451
        %v453 = vpop.f32.mrb[0].mxu0
        %v454 = vadd.f32 0.0, %v453
        %455 = vdwg.mxu0
        %456 = vmatprep.subr.mxu0 0.0
        %457 = vmatpush1.msra.mxu0 %v349
        %458 = vmatprep.subr.mxu0 0.0
        %459 = vmatpush1.msra.mxu0 %v352
        %460 = vmatprep.subr.mxu0 0.0
        %461 = vmatpush1.msra.mxu0 %v355
        %462 = vmatprep.subr.mxu0 0.0
        %463 = vmatpush1.msra.mxu0 %v358
        %464 = vmatprep.subr.mxu0 0.0
        %465 = vmatpush1.msra.mxu0 %v377
        %466 = vmatprep.subr.mxu0 0.0
        %467 = vmatpush1.msra.mxu0 0.0
        %468 = vmatprep.subr.mxu0 0.0
        %469 = vmatpush1.msra.mxu0 0.0
        %470 = vmatprep.subr.mxu0 0.0
        %471 = vmatpush1.msra.mxu0 0.0
        %472 = vmatprep.subr.mxu0 0.0
        %473 = vmatpush1.msra.mxu0 0.0
        %474 = vmatprep.subr.mxu0 0.0
        %475 = vmatpush1.msra.mxu0 0.0
        %476 = vmatprep.subr.mxu0 0.0
        %477 = vmatpush1.msra.mxu0 0.0
        %478 = vmatprep.subr.mxu0 0.0
        %479 = vmatpush1.msra.mxu0 0.0
        %480 = vmatprep.subr.mxu0 0.0
        %481 = vmatpush1.msra.mxu0 0.0
        %482 = vmatprep.subr.mxu0 0.0
        %483 = vmatpush1.msra.mxu0 0.0
        %484 = vmatprep.subr.mxu0 0.0
        %485 = vmatpush1.msra.mxu0 0.0
        %486 = vmatprep.subr.mxu0 0.0
        %487 = vmatpush1.msra.mxu0 0.0
        %488 = vmatprep.subr.mxu0 0.0
        %489 = vmatpush1.msra.mxu0 0.0
        %490 = vmatprep.subr.mxu0 0.0
        %491 = vmatpush1.msra.mxu0 0.0
        %492 = vmatprep.subr.mxu0 0.0
        %493 = vmatpush1.msra.mxu0 0.0
        %494 = vmatprep.subr.mxu0 0.0
        %495 = vmatpush1.msra.mxu0 0.0
        %496 = vmatprep.subr.mxu0 0.0
        %497 = vmatpush1.msra.mxu0 0.0
        %498 = vmatprep.subr.mxu0 0.0
        %499 = vmatpush1.msra.mxu0 0.0
        %500 = vmatprep.subr.mxu0 0.0
        %501 = vmatpush1.msra.mxu0 0.0
        %502 = vmatprep.subr.mxu0 0.0
        %503 = vmatpush1.msra.mxu0 0.0
        %504 = vmatprep.subr.mxu0 0.0
        %505 = vmatpush1.msra.mxu0 0.0
        %506 = vmatprep.subr.mxu0 0.0
        %507 = vmatpush1.msra.mxu0 0.0
        %508 = vmatprep.subr.mxu0 0.0
        %509 = vmatpush1.msra.mxu0 0.0
        %510 = vmatprep.subr.mxu0 0.0
        %511 = vmatpush1.msra.mxu0 0.0
        %512 = vmatprep.subr.mxu0 0.0
        %513 = vmatpush1.msra.mxu0 0.0
        %514 = vmatprep.subr.mxu0 0.0
        %515 = vmatpush1.msra.mxu0 0.0
        %516 = vmatprep.subr.mxu0 0.0
        %517 = vmatpush1.msra.mxu0 0.0
        %518 = vmatprep.subr.mxu0 0.0
        %519 = vmatpush1.msra.mxu0 0.0
        %520 = vmatprep.mubr.f32.mxu0 0.0
        %521 = vmatmul.mubr.f32.gmra.mrb[0].mxu0 %v364
        %v522 = vpop.f32.mrb[0].mxu0
        %v523 = vadd.f32 0.0, %v522
        %v524 = vpop.f32.mrb[0].mxu0
        %525 = vmatprep.mubr.f32.mxu0 0.0
        %526 = vmatmul.mubr.f32.gmra.mrb[0].mxu0 %v367
        %v527 = vpop.f32.mrb[0].mxu0
        %v528 = vadd.f32 0.0, %v527
        %v529 = vpop.f32.mrb[0].mxu0
        %530 = vdwg.mxu0
        %v531 = vld [vmem:[%s3] sm:$0xff]
        %v532 = vld [vmem:[%s3 + $0x8] sm:$0xff]
        %534 = vset.pattern.permute.xlu0 0
        %535 = vperm.xlu0 %534, %v531
        %v536 = vpop.permute.xlu0 %535
        %539 = vset.pattern.permute.xlu0 0
        %540 = vperm.xlu0 %539, %v532
        %v541 = vpop.permute.xlu0 %540
        %v543 = vmul.f32 %v446, %v536
        %v544 = vmul.f32 %v448, %v536
        %v545 = vmul.f32 %v523, %v536
        %v546 = vmul.f32 %v452, %v541
        %v547 = vmul.f32 %v454, %v541
        %v548 = vmul.f32 %v528, %v541
        %v549 = vld [vmem:[%s4] sm:$0xff]
        %v550 = vld [vmem:[%s4 + $0x8] sm:$0xff]
        %552 = vset.pattern.permute.xlu0 0
        %553 = vperm.xlu0 %552, %v549
        %v554 = vpop.permute.xlu0 %553
        %557 = vset.pattern.permute.xlu0 0
        %558 = vperm.xlu0 %557, %v550
        %v559 = vpop.permute.xlu0 %558
        %v561 = vadd.f32 %v543, %v554
        %v562 = vadd.f32 %v544, %v554
        %v563 = vadd.f32 %v545, %v554
        %v564 = vadd.f32 %v546, %v559
        %v565 = vadd.f32 %v547, %v559
        %v566 = vadd.f32 %v548, %v559
        %v567 = vmax.f32 %v561, 0.0
        %v568 = vmax.f32 %v562, 0.0
        %v569 = vmax.f32 %v563, 0.0
        %v570 = vld [vmem:[%s342] sm:$0x7]
        %v572 = vlaneseq
        %v573 = vshrl.u32 %v572, 7
        %v574 = vsub.s32 0, %v573
        %v575 = vrot.slane %v570, %v574
        %v576 = vlaneseq
        %v577 = vshrl.u32 %v576, 7
        %v578 = vsub.s32 1, %v577
        %v579 = vrot.slane %v570, %v578
        %v580 = vlaneseq
        %v581 = vshrl.u32 %v580, 7
        %v582 = vsub.s32 2, %v581
        %v583 = vrot.slane %v570, %v582
        %v587 = vmul.f32 %v567, %v575
        %v588 = vmul.f32 %v568, %v579
        %v589 = vmul.f32 %v569, %v583
        %590 = vrot.lane.b32.xlu0 %v587, 19
        %v591 = vpop.permute.xlu0 %590
        %592 = vrot.lane.b32.xlu0 %v588, 19
        %v593 = vpop.permute.xlu0 %592
        %594 = vrot.lane.b32.xlu0 %v589, 19
        %v595 = vpop.permute.xlu0 %594
        %v596 = vlaneseq
        %v597 = vand.u32 %v596, 127
        %vm598 = vcmp.lt.s32.totalorder %v597, 19
        %v599 = vsel %vm598, %v593, %v595
        %v600 = vsel %vm598, %v591, %v593
        %v601 = vsel %vm598, %v595, %v591
        %602 = vrot.lane.b32.xlu0 %v587, 18
        %v603 = vpop.permute.xlu0 %602
        %604 = vrot.lane.b32.xlu0 %v588, 18
        %v605 = vpop.permute.xlu0 %604
        %606 = vrot.lane.b32.xlu0 %v589, 18
        %v607 = vpop.permute.xlu0 %606
        %vm608 = vcmp.lt.s32.totalorder %v597, 18
        %v609 = vsel %vm608, %v605, %v607
        %v610 = vsel %vm608, %v603, %v605
        %v611 = vsel %vm608, %v607, %v603
        %612 = vrot.lane.b32.xlu0 %v587, 17
        %v613 = vpop.permute.xlu0 %612
        %614 = vrot.lane.b32.xlu0 %v588, 17
        %v615 = vpop.permute.xlu0 %614
        %616 = vrot.lane.b32.xlu0 %v589, 17
        %v617 = vpop.permute.xlu0 %616
        %vm618 = vcmp.lt.s32.totalorder %v597, 17
        %v619 = vsel %vm618, %v615, %v617
        %v620 = vsel %vm618, %v613, %v615
        %v621 = vsel %vm618, %v617, %v613
        %622 = vrot.lane.b32.xlu0 %v587, 1
        %v623 = vpop.permute.xlu0 %622
        %624 = vrot.lane.b32.xlu0 %v588, 1
        %v625 = vpop.permute.xlu0 %624
        %626 = vrot.lane.b32.xlu0 %v589, 1
        %v627 = vpop.permute.xlu0 %626
        %vm628 = vcmp.lt.s32.totalorder %v597, 1
        %v629 = vsel %vm628, %v625, %v627
        %v630 = vsel %vm628, %v623, %v625
        %v631 = vsel %vm628, %v627, %v623
        %632 = vrot.lane.b32.xlu0 %v587, 127
        %v633 = vpop.permute.xlu0 %632
        %634 = vrot.lane.b32.xlu0 %v588, 127
        %v635 = vpop.permute.xlu0 %634
        %636 = vrot.lane.b32.xlu0 %v589, 127
        %v637 = vpop.permute.xlu0 %636
        %vm638 = vcmp.lt.s32.totalorder %v597, 127
        %v639 = vsel %vm638, %v635, %v637
        %v640 = vsel %vm638, %v633, %v635
        %v641 = vsel %vm638, %v637, %v633
        %642 = vrot.lane.b32.xlu0 %v587, 111
        %v643 = vpop.permute.xlu0 %642
        %644 = vrot.lane.b32.xlu0 %v588, 111
        %v645 = vpop.permute.xlu0 %644
        %646 = vrot.lane.b32.xlu0 %v589, 111
        %v647 = vpop.permute.xlu0 %646
        %vm648 = vcmp.lt.s32.totalorder %v597, 111
        %v649 = vsel %vm648, %v645, %v647
        %v650 = vsel %vm648, %v643, %v645
        %v651 = vsel %vm648, %v647, %v643
        %652 = vrot.lane.b32.xlu0 %v587, 110
        %v653 = vpop.permute.xlu0 %652
        %654 = vrot.lane.b32.xlu0 %v588, 110
        %v655 = vpop.permute.xlu0 %654
        %656 = vrot.lane.b32.xlu0 %v589, 110
        %v657 = vpop.permute.xlu0 %656
        %vm658 = vcmp.lt.s32.totalorder %v597, 110
        %v659 = vsel %vm658, %v655, %v657
        %v660 = vsel %vm658, %v653, %v655
        %v661 = vsel %vm658, %v657, %v653
        %662 = vrot.lane.b32.xlu0 %v587, 109
        %v663 = vpop.permute.xlu0 %662
        %664 = vrot.lane.b32.xlu0 %v588, 109
        %v665 = vpop.permute.xlu0 %664
        %666 = vrot.lane.b32.xlu0 %v589, 109
        %v667 = vpop.permute.xlu0 %666
        %vm668 = vcmp.lt.s32.totalorder %v597, 109
        %v669 = vsel %vm668, %v665, %v667
        %v670 = vsel %vm668, %v663, %v665
        %v671 = vsel %vm668, %v667, %v663
        %v672 = vld [vmem:[%s5] sm:$0xff]
        %vm673 = vcmask 588800
        %v675 = vsel %vm673, %v672, 0
        %677 = vmatprep.subr.mxu0 %v600
        %678 = vmatpush1.msra.mxu0 %v601
        %679 = vmatprep.subr.mxu0 %v610
        %680 = vmatpush1.msra.mxu0 %v611
        %681 = vmatprep.subr.mxu0 %v620
        %682 = vmatpush1.msra.mxu0 %v621
        %683 = vmatprep.subr.mxu0 %v630
        %684 = vmatpush1.msra.mxu0 %v631
        %685 = vmatprep.subr.mxu0 %v588
        %686 = vmatpush1.msra.mxu0 %v587
        %687 = vmatprep.subr.mxu0 %v639
        %688 = vmatpush1.msra.mxu0 %v640
        %689 = vmatprep.subr.mxu0 %v649
        %690 = vmatpush1.msra.mxu0 %v650
        %691 = vmatprep.subr.mxu0 %v659
        %692 = vmatpush1.msra.mxu0 %v660
        %693 = vmatprep.subr.mxu0 %v669
        %694 = vmatpush1.msra.mxu0 %v670
        %695 = vmatprep.subr.mxu0 0.0
        %696 = vmatpush1.msra.mxu0 0.0
        %697 = vmatprep.subr.mxu0 0.0
        %698 = vmatpush1.msra.mxu0 0.0
        %699 = vmatprep.subr.mxu0 0.0
        %700 = vmatpush1.msra.mxu0 0.0
        %701 = vmatprep.subr.mxu0 0.0
        %702 = vmatpush1.msra.mxu0 0.0
        %703 = vmatprep.subr.mxu0 0.0
        %704 = vmatpush1.msra.mxu0 0.0
        %705 = vmatprep.subr.mxu0 0.0
        %706 = vmatpush1.msra.mxu0 0.0
        %707 = vmatprep.subr.mxu0 0.0
        %708 = vmatpush1.msra.mxu0 0.0
        %709 = vmatprep.subr.mxu0 0.0
        %710 = vmatpush1.msra.mxu0 0.0
        %711 = vmatprep.subr.mxu0 0.0
        %712 = vmatpush1.msra.mxu0 0.0
        %713 = vmatprep.subr.mxu0 0.0
        %714 = vmatpush1.msra.mxu0 0.0
        %715 = vmatprep.subr.mxu0 0.0
        %716 = vmatpush1.msra.mxu0 0.0
        %717 = vmatprep.subr.mxu0 0.0
        %718 = vmatpush1.msra.mxu0 0.0
        %719 = vmatprep.subr.mxu0 0.0
        %720 = vmatpush1.msra.mxu0 0.0
        %721 = vmatprep.subr.mxu0 0.0
        %722 = vmatpush1.msra.mxu0 0.0
        %723 = vmatprep.subr.mxu0 0.0
        %724 = vmatpush1.msra.mxu0 0.0
        %725 = vmatprep.subr.mxu0 0.0
        %726 = vmatpush1.msra.mxu0 0.0
        %727 = vmatprep.subr.mxu0 0.0
        %728 = vmatpush1.msra.mxu0 0.0
        %729 = vmatprep.subr.mxu0 0.0
        %730 = vmatpush1.msra.mxu0 0.0
        %731 = vmatprep.subr.mxu0 0.0
        %732 = vmatpush1.msra.mxu0 0.0
        %733 = vmatprep.subr.mxu0 0.0
        %734 = vmatpush1.msra.mxu0 0.0
        %735 = vmatprep.subr.mxu0 0.0
        %736 = vmatpush1.msra.mxu0 0.0
        %737 = vmatprep.subr.mxu0 0.0
        %738 = vmatpush1.msra.mxu0 0.0
        %739 = vmatprep.subr.mxu0 0.0
        %740 = vmatpush1.msra.mxu0 0.0
        %741 = vmatprep.mubr.f32.mxu0 0.0
        %742 = vmatmul.mubr.f32.gmra.mrb[0].mxu0 %v675
        %v743 = vpop.f32.mrb[0].mxu0
        %v744 = vadd.f32 0.0, %v743
        %v745 = vpop.f32.mrb[0].mxu0
        %v746 = vadd.f32 0.0, %v745
        %747 = vdwg.mxu0
        %748 = vmatprep.subr.mxu0 0.0
        %749 = vmatpush1.msra.mxu0 %v599
        %750 = vmatprep.subr.mxu0 0.0
        %751 = vmatpush1.msra.mxu0 %v609
        %752 = vmatprep.subr.mxu0 0.0
        %753 = vmatpush1.msra.mxu0 %v619
        %754 = vmatprep.subr.mxu0 0.0
        %755 = vmatpush1.msra.mxu0 %v629
        %756 = vmatprep.subr.mxu0 0.0
        %757 = vmatpush1.msra.mxu0 %v589
        %758 = vmatprep.subr.mxu0 0.0
        %759 = vmatpush1.msra.mxu0 %v641
        %760 = vmatprep.subr.mxu0 0.0
        %761 = vmatpush1.msra.mxu0 %v651
        %762 = vmatprep.subr.mxu0 0.0
        %763 = vmatpush1.msra.mxu0 %v661
        %764 = vmatprep.subr.mxu0 0.0
        %765 = vmatpush1.msra.mxu0 %v671
        %766 = vmatprep.subr.mxu0 0.0
        %767 = vmatpush1.msra.mxu0 0.0
        %768 = vmatprep.subr.mxu0 0.0
        %769 = vmatpush1.msra.mxu0 0.0
        %770 = vmatprep.subr.mxu0 0.0
        %771 = vmatpush1.msra.mxu0 0.0
        %772 = vmatprep.subr.mxu0 0.0
        %773 = vmatpush1.msra.mxu0 0.0
        %774 = vmatprep.subr.mxu0 0.0
        %775 = vmatpush1.msra.mxu0 0.0
        %776 = vmatprep.subr.mxu0 0.0
        %777 = vmatpush1.msra.mxu0 0.0
        %778 = vmatprep.subr.mxu0 0.0
        %779 = vmatpush1.msra.mxu0 0.0
        %780 = vmatprep.subr.mxu0 0.0
        %781 = vmatpush1.msra.mxu0 0.0
        %782 = vmatprep.subr.mxu0 0.0
        %783 = vmatpush1.msra.mxu0 0.0
        %784 = vmatprep.subr.mxu0 0.0
        %785 = vmatpush1.msra.mxu0 0.0
        %786 = vmatprep.subr.mxu0 0.0
        %787 = vmatpush1.msra.mxu0 0.0
        %788 = vmatprep.subr.mxu0 0.0
        %789 = vmatpush1.msra.mxu0 0.0
        %790 = vmatprep.subr.mxu0 0.0
        %791 = vmatpush1.msra.mxu0 0.0
        %792 = vmatprep.subr.mxu0 0.0
        %793 = vmatpush1.msra.mxu0 0.0
        %794 = vmatprep.subr.mxu0 0.0
        %795 = vmatpush1.msra.mxu0 0.0
        %796 = vmatprep.subr.mxu0 0.0
        %797 = vmatpush1.msra.mxu0 0.0
        %798 = vmatprep.subr.mxu0 0.0
        %799 = vmatpush1.msra.mxu0 0.0
        %800 = vmatprep.subr.mxu0 0.0
        %801 = vmatpush1.msra.mxu0 0.0
        %802 = vmatprep.subr.mxu0 0.0
        %803 = vmatpush1.msra.mxu0 0.0
        %804 = vmatprep.subr.mxu0 0.0
        %805 = vmatpush1.msra.mxu0 0.0
        %806 = vmatprep.subr.mxu0 0.0
        %807 = vmatpush1.msra.mxu0 0.0
        %808 = vmatprep.subr.mxu0 0.0
        %809 = vmatpush1.msra.mxu0 0.0
        %810 = vmatprep.subr.mxu0 0.0
        %811 = vmatpush1.msra.mxu0 0.0
        %812 = vmatprep.mubr.f32.mxu0 0.0
        %813 = vmatmul.mubr.f32.gmra.mrb[0].mxu0 %v675
        %v814 = vpop.f32.mrb[0].mxu0
        %v815 = vadd.f32 0.0, %v814
        %v816 = vpop.f32.mrb[0].mxu0
        %817 = vdwg.mxu0
        %v818 = vld [vmem:[%s6] sm:$0xff]
        %820 = vset.pattern.permute.xlu0 0
        %821 = vperm.xlu0 %820, %v818
        %v822 = vpop.permute.xlu0 %821
        %v824 = vmul.f32 %v744, %v822
        %v825 = vmul.f32 %v746, %v822
        %v826 = vmul.f32 %v815, %v822
        %v827 = vld [vmem:[%s7] sm:$0xff]
        %829 = vset.pattern.permute.xlu0 0
        %830 = vperm.xlu0 %829, %v827
        %v831 = vpop.permute.xlu0 %830
        %v833 = vadd.f32 %v824, %v831
        %v834 = vadd.f32 %v825, %v831
        %v835 = vadd.f32 %v826, %v831
        %v836 = vadd.f32 %v833, %v564
        %v837 = vadd.f32 %v834, %v565
        %v838 = vadd.f32 %v835, %v566
        %v839 = vmax.f32 %v836, 0.0
        %v840 = vmax.f32 %v837, 0.0
        %v841 = vmax.f32 %v838, 0.0
        %842 = vst [vmem:[%s337] sm:$0xff] %v839
        %843 = vst [vmem:[%s337 + $0x8] sm:$0xff] %v840
        %844 = vst [vmem:[%s337 + $0x10] sm:$0xff] %v841
        %s845 = sand.u32 %s211, 1
        %s846 = scalar_lea.sflag [#allocation4], %s845
        %s847 = sand.u32 %s211, 1
        %s848 = smul.addr %s847, 24
        %s849 = scalar_lea.vmem [#allocation5], %s848
        // Predicated region
        $region57: #{tpu_custom_call.1} parent=51 // pred_check
          %p850 = pneg %p221
        $region58: #{tpu_custom_call.1} parent=51 // pred_check_branch
          %852 = sbr.rel (%p850) target = $region60
        $region59: #{tpu_custom_call.1} parent=51 // pred_region
          %s853 = smul.u32 3, %s25
          %s855 = ssub.s32 384, 384
          %856 = vsyncadd %s846, %s855
          %s857 = smul.addr %s853, 128
          %s858 = scalar_lea.hbm %s8, %s857
          %s860 = sshll.u32 %s849, 4
          %s861 = int_to_ptr.vmem [resolvable:$true] %s860
          %863 = dma.vmem_to_hbm [thread:$0]  %s861, 384, %s858, %s846
        $region60: #{tpu_custom_call.1} parent=51 // pred_fallthru
          _
      $region52: #{tpu_custom_call.1} parent=5 // pred_fallthru
        _
      %p864 = scmp.le.s32.totalorder 2, %s20
      // Predicated region
      $region61: #{tpu_custom_call.1} parent=5 // pred_check
        %p865 = pneg %p864
      $region62: #{tpu_custom_call.1} parent=5 // pred_check_branch
        %867 = sbr.rel (%p865) target = $region64
      $region63: #{tpu_custom_call.1} parent=5 // pred_region
        %s868 = ssub.s32 %s20, 2
        // Predicated region
        $region65: #{tpu_custom_call.1} parent=63 // pred_check
          %p869 = pneg %p227
        $region66: #{tpu_custom_call.1} parent=63 // pred_check_branch
          %871 = sbr.rel (%p869) target = $region68
        $region67: #{tpu_custom_call.1} parent=63 // pred_region
          %s872 = sand.u32 %s212, 1
          %s873 = scalar_lea.sflag [#allocation4], %s872
          %s874 = sand.u32 %s212, 1
          %s875 = smul.addr %s874, 24
          %s876 = scalar_lea.vmem [#allocation5], %s875
          %877 = dma.done %s873, 384
        $region68: #{tpu_custom_call.1} parent=63 // pred_fallthru
          _
      $region64: #{tpu_custom_call.1} parent=5 // pred_fallthru
        _
    $region6: #{tpu_custom_call.1} parent=1 // loop_footer
      %s24 = sadd.s32 1, %s20
    $region7: #{tpu_custom_call.1} parent=1 // loop_footer_branch
      %19 = sbr.rel target = $region3
    $region8: #{tpu_custom_call.1} parent=1 // loop_exit
      _
    %878 = vsyncpa [#allocation3], 1
    %s879 = scalar_lea.sflag [#allocation3], 1
    %880 = vsyncpa %s879, 1
    %881 = vsyncpa [#allocation4], 1
    %s882 = scalar_lea.sflag [#allocation4], 1
    %883 = vsyncpa %s882, 1

</llo_original>
